<compile_context>
chip_gen: v7x
topology: tpu7x:2x2x1
jax: 0.10.0
libtpu: 0.0.40
codegen_flags: <defaults>
</compile_context>

<pallas_src>
import jax
import jax.numpy as jnp
from jax.experimental import pallas as pl
from jax.experimental.pallas import tpu as pltpu

SUBLANE = 8


def rnn_step_kernel(tok_ref, h_ref, xtab_ref, w_hh_t_ref, w_lin_t_ref, b_lin_ref,
                    out_ref, h_out_ref):
    """Fused one-hot embedding/pre-activation gather + Elman step + projection.

    tok_ref:    VMEM (Bp, 1)  int32 token indices (padded rows hold 0)
    h_ref:      VMEM (Bp, H)  previous hidden state (aliased with h_out_ref)
    xtab_ref:   VMEM (V,  H)  embed @ W_ih^T + b_ih + b_hh   (precomputed)
    w_hh_t_ref: VMEM (H,  H)  W_hh^T
    w_lin_t_ref:VMEM (H,  O)  W_lin^T
    b_lin_ref:  VMEM (1,  O)  linear bias
    out_ref:    VMEM (Bp, O)  linear-layer output
    h_out_ref:  VMEM (Bp, H)  new hidden state
    """
    bp = tok_ref.shape[0]
    vocab = xtab_ref.shape[0]

    # One-hot gather on the MXU: (Bp, V) @ (V, H).  Replaces B serial
    # unaligned dynamic-slice loads + a B-way concatenate.
    one_hot = (jax.lax.broadcasted_iota(jnp.int32, (bp, vocab), 1)
               == tok_ref[...]).astype(jnp.float32)
    x_pre = jnp.dot(one_hot, xtab_ref[...],
                    preferred_element_type=jnp.float32)          # (Bp, H), biases folded in

    pre = x_pre + jnp.dot(h_ref[...], w_hh_t_ref[...],
                          preferred_element_type=jnp.float32)
    h_new = jnp.tanh(pre)                                        # f32 tanh (EUP)
    h_out_ref[...] = h_new.astype(h_out_ref.dtype)

    out = jnp.dot(h_new, w_lin_t_ref[...],
                  preferred_element_type=jnp.float32) + b_lin_ref[...]
    out_ref[...] = out.astype(out_ref.dtype)


@jax.jit
def rnn_forward(tokens, hidden, params):
    """Mirrors RNN.forward(input, hidden) for model_type='rnn', n_layers=1.

    tokens: int32 (B,)     -- token indices
    hidden: f32  (1, B, H) -- previous hidden state (NOT modified in place)
    returns (output (B, O), hidden (1, B, H))
    """
    B = tokens.shape[0]
    H = params["w_hh_t"].shape[0]
    O = params["b_lin"].shape[1]
    Bp = max(SUBLANE, ((B + SUBLANE - 1) // SUBLANE) * SUBLANE)

    h0 = hidden[0]                                               # (B, H), n_layers == 1
    # Pad batch up to the sublane width; padded rows use token 0 / zero state
    # and are sliced away below.  These padded temporaries live only inside
    # this jit, so aliasing h0_p -> new hidden is safe for the caller.
    tok_p = jnp.zeros((Bp, 1), jnp.int32).at[:B, 0].set(tokens.astype(jnp.int32))
    h0_p = jnp.zeros((Bp, H), jnp.float32).at[:B].set(h0.astype(jnp.float32))

    out_p, h_new_p = pl.pallas_call(
        rnn_step_kernel,
        out_shape=(
            jax.ShapeDtypeStruct((Bp, O), jnp.float32),
            jax.ShapeDtypeStruct((Bp, H), jnp.float32),
        ),
        in_specs=[
            pl.BlockSpec(memory_space=pltpu.MemorySpace.VMEM),   # tokens (Bp, 1)
            pl.BlockSpec(memory_space=pltpu.MemorySpace.VMEM),   # h0     (Bp, H)
            pl.BlockSpec(memory_space=pltpu.MemorySpace.VMEM),   # x-preact table (V, H)
            pl.BlockSpec(memory_space=pltpu.MemorySpace.VMEM),   # W_hh^T (H, H)
            pl.BlockSpec(memory_space=pltpu.MemorySpace.VMEM),   # W_lin^T (H, O)
            pl.BlockSpec(memory_space=pltpu.MemorySpace.VMEM),   # b_lin  (1, O)
        ],
        out_specs=(
            pl.BlockSpec(memory_space=pltpu.MemorySpace.VMEM),   # output (Bp, O)
            pl.BlockSpec(memory_space=pltpu.MemorySpace.VMEM),   # new hidden (Bp, H)
        ),
        # h0_p (input 1) is a jit-local temporary -> safe, copy-free aliasing
        # with the new hidden state (output 1).
        input_output_aliases={1: 1},
    )(
        tok_p,
        h0_p,
        params["x_pre_tab"],
        params["w_hh_t"],
        params["w_lin_t"],
        params["b_lin"],
    )
    return out_p[:B], h_new_p[:B][None]                          # hidden back to (1, B, H)


def init_params(key, input_size, hidden_size, output_size):
    """Synthetic parameters matching the PyTorch module's shapes.

    Returns (kernel_params, raw_params): kernel_params are pre-fused and in the
    final (in, out) f32 layout (no per-call casts/transposes); raw_params keep
    the original PyTorch layout for the reference check.
    """
    ks = jax.random.split(key, 7)
    embed = jax.random.normal(ks[0], (input_size, hidden_size), jnp.float32) * 0.1
    # PyTorch nn.RNN stores weight_ih_l0 / weight_hh_l0 as (H_out, H_in).
    w_ih = jax.random.normal(ks[1], (hidden_size, hidden_size), jnp.float32) * 0.1
    w_hh = jax.random.normal(ks[2], (hidden_size, hidden_size), jnp.float32) * 0.1
    b_ih = jax.random.normal(ks[3], (hidden_size,), jnp.float32) * 0.1
    b_hh = jax.random.normal(ks[4], (hidden_size,), jnp.float32) * 0.1
    # nn.Linear stores weight as (output_size, hidden_size).
    w_lin = jax.random.normal(ks[5], (output_size, hidden_size), jnp.float32) * 0.1
    b_lin = jax.random.normal(ks[6], (output_size,), jnp.float32) * 0.1

    kernel_params = {
        # Input pre-activation table: folds the embedding lookup, the input
        # projection and BOTH biases into a single gatherable (V, H) table.
        "x_pre_tab": embed @ w_ih.T + b_ih + b_hh,
        "w_hh_t": w_hh.T,
        "w_lin_t": w_lin.T,
        "b_lin": b_lin.reshape(1, output_size),
    }
    raw_params = {
        "embed": embed, "w_ih": w_ih, "w_hh": w_hh,
        "b_ih": b_ih, "b_hh": b_hh, "w_lin": w_lin, "b_lin": b_lin,
    }
    return kernel_params, raw_params


if __name__ == "__main__":
    input_size = 16     # vocabulary size
    hidden_size = 32
    output_size = 8
    batch_size = 2
    n_layers = 1

    key = jax.random.PRNGKey(0)
    k_param, k_tok = jax.random.split(key)
    params, raw = init_params(k_param, input_size, hidden_size, output_size)

    tokens = jax.random.randint(k_tok, (batch_size,), 0, input_size, jnp.int32)
    # init_hidden(batch_size): zeros of shape (n_layers, batch, hidden)
    hidden0 = jnp.zeros((n_layers, batch_size, hidden_size), jnp.float32)

    output, hidden = rnn_forward(tokens, hidden0, params)
    jax.block_until_ready((output, hidden))

    # Pure-JAX reference with the UNFUSED PyTorch math (verifies the algebraic
    # folding of embed @ W_ih^T + biases into the pre-activation table).
    emb_ref = raw["embed"][tokens]                               # (B, H)
    h_prev = hidden0[0]
    pre_ref = (emb_ref @ raw["w_ih"].T + raw["b_ih"]
               + h_prev @ raw["w_hh"].T + raw["b_hh"])
    h_ref = jnp.tanh(pre_ref)
    out_ref = h_ref @ raw["w_lin"].T + raw["b_lin"]

    assert output.shape == (batch_size, output_size)
    assert hidden.shape == (n_layers, batch_size, hidden_size)
    assert jnp.allclose(output, out_ref, atol=1e-4), "output mismatch"
    assert jnp.allclose(hidden[0], h_ref, atol=1e-4), "hidden mismatch"

    print("KERNEL_OK")
</pallas_src>

<mosaic_0001>
module attributes {stable_mosaic.version = 11 : i64} {
  func.func @rnn_step_kernel(%arg0: memref<8x1xi32, #tpu.memory_space<vmem>>, %arg1: memref<8x32xf32, #tpu.memory_space<vmem>>, %arg2: memref<16x32xf32, #tpu.memory_space<vmem>>, %arg3: memref<32x32xf32, #tpu.memory_space<vmem>>, %arg4: memref<32x8xf32, #tpu.memory_space<vmem>>, %arg5: memref<1x8xf32, #tpu.memory_space<vmem>>, %arg6: memref<8x8xf32, #tpu.memory_space<vmem>>, %arg7: memref<8x32xf32, #tpu.memory_space<vmem>>) attributes {dimension_semantics = [], scalar_prefetch = 0 : i64, scratch_operands = 0 : i64, tpu.core_type = #tpu.core_type<tc>} {
    %0 = tpu.iota {dimensions = array<i32: 1>} : vector<8x16xi32>
    %c0 = arith.constant 0 : index
    %c0_0 = arith.constant 0 : index
    %1 = vector.load %arg0[%c0, %c0_0] : memref<8x1xi32, #tpu.memory_space<vmem>>, vector<8x1xi32>
    %2 = vector.broadcast %1 : vector<8x1xi32> to vector<8x16xi32>
    %3 = arith.cmpi eq, %0, %2 : vector<8x16xi32>
    %4 = arith.extui %3 : vector<8x16xi1> to vector<8x16xi32>
    %5 = arith.sitofp %4 : vector<8x16xi32> to vector<8x16xf32>
    %c0_1 = arith.constant 0 : index
    %c0_2 = arith.constant 0 : index
    %6 = vector.load %arg2[%c0_1, %c0_2] : memref<16x32xf32, #tpu.memory_space<vmem>>, vector<16x32xf32>
    %cst = arith.constant dense<0.000000e+00> : vector<8x32xf32>
    %7 = tpu.matmul %5, %6, %cst {dimension_numbers = #tpu.dot_dimension_numbers<[1], [0], [0], [1], [0, 0, 1, 1], [], []>} : vector<8x16xf32>, vector<16x32xf32>, vector<8x32xf32> -> vector<8x32xf32>
    %c0_3 = arith.constant 0 : index
    %c0_4 = arith.constant 0 : index
    %8 = vector.load %arg1[%c0_3, %c0_4] : memref<8x32xf32, #tpu.memory_space<vmem>>, vector<8x32xf32>
    %c0_5 = arith.constant 0 : index
    %c0_6 = arith.constant 0 : index
    %9 = vector.load %arg3[%c0_5, %c0_6] : memref<32x32xf32, #tpu.memory_space<vmem>>, vector<32x32xf32>
    %cst_7 = arith.constant dense<0.000000e+00> : vector<8x32xf32>
    %10 = tpu.matmul %8, %9, %cst_7 {dimension_numbers = #tpu.dot_dimension_numbers<[1], [0], [0], [1], [0, 0, 1, 1], [], []>} : vector<8x32xf32>, vector<32x32xf32>, vector<8x32xf32> -> vector<8x32xf32>
    %11 = arith.addf %7, %10 : vector<8x32xf32>
    %12 = math.tanh %11 : vector<8x32xf32>
    %c0_8 = arith.constant 0 : index
    %c0_9 = arith.constant 0 : index
    %13 = vector.load %arg7[%c0_8, %c0_9] : memref<8x32xf32, #tpu.memory_space<vmem>>, vector<8x32xf32>
    tpu.vector_store %arg7[%c0_8, %c0_9], %12 {strides = array<i32>} : memref<8x32xf32, #tpu.memory_space<vmem>>, vector<8x32xf32>,
    %c0_10 = arith.constant 0 : index
    %c0_11 = arith.constant 0 : index
    %14 = vector.load %arg4[%c0_10, %c0_11] : memref<32x8xf32, #tpu.memory_space<vmem>>, vector<32x8xf32>
    %cst_12 = arith.constant dense<0.000000e+00> : vector<8x8xf32>
    %15 = tpu.matmul %12, %14, %cst_12 {dimension_numbers = #tpu.dot_dimension_numbers<[1], [0], [0], [1], [0, 0, 1, 1], [], []>} : vector<8x32xf32>, vector<32x8xf32>, vector<8x8xf32> -> vector<8x8xf32>
    %c0_13 = arith.constant 0 : index
    %c0_14 = arith.constant 0 : index
    %16 = vector.load %arg5[%c0_13, %c0_14] : memref<1x8xf32, #tpu.memory_space<vmem>>, vector<1x8xf32>
    %17 = vector.broadcast %16 : vector<1x8xf32> to vector<8x8xf32>
    %18 = arith.addf %15, %17 : vector<8x8xf32>
    %c0_15 = arith.constant 0 : index
    %c0_16 = arith.constant 0 : index
    %19 = vector.load %arg6[%c0_15, %c0_16] : memref<8x8xf32, #tpu.memory_space<vmem>>, vector<8x8xf32>
    tpu.vector_store %arg6[%c0_15, %c0_16], %18 {strides = array<i32>} : memref<8x8xf32, #tpu.memory_space<vmem>>, vector<8x8xf32>,
    return
  }
}

</mosaic_0001>

<llo_original>
// kernel: rnn_forward.1
$region0: #{rnn_forward.1}
  #allocation0 [shape = 'u32[]', space=smem, size = 0x4, offset = 0x4, fixed_abs, tag = 'smem constant byte address 0x4 - core index']
  #allocation1 [shape = 'u32[144,128]{1,0:T(1,128)}', space=vmem, size = 0x12000, scoped, tag = 'internal scratch']
  %s0 = inlined_call_operand.vmem [shape: s32[8,1], index: 0, kind: input, shape index: {}]
  %s1 = inlined_call_operand.vmem [shape: f32[8,32], index: 1, kind: input, shape index: {}, may-alias: {1,7}]
  %s2 = inlined_call_operand.vmem [shape: f32[16,32], index: 2, kind: input, shape index: {}]
  %s3 = inlined_call_operand.vmem [shape: f32[32,32], index: 3, kind: input, shape index: {}]
  %s4 = inlined_call_operand.vmem [shape: f32[32,8], index: 4, kind: input, shape index: {}]
  %s5 = inlined_call_operand.vmem [shape: f32[1,8], index: 5, kind: input, shape index: {}]
  %s6 = inlined_call_operand.vmem [shape: f32[8,8], index: 6, kind: output, shape index: {0}]
  %s7 = inlined_call_operand.vmem [shape: f32[8,32], index: 7, kind: output, shape index: {1}, may-alias: {1,7}]
  %8 = xla_tuple %s6, %s7
  %s9 = sld [smem:[#allocation0]]
  $region42: #{rnn_forward.1} parent=0
    _
  %s11 = ssub.s32 1, %s9
  %s12 = scalar_select 0, %s11, %s9
  // Predicated region
  $region2: #{rnn_forward.1} parent=0 // pred_check
    _
  $region3: #{rnn_forward.1} parent=0 // pred_check_branch
    %14 = sbr.rel (0) target = $region5
  $region4: #{rnn_forward.1} parent=0 // pred_region
    _
  $region5: #{rnn_forward.1} parent=0 // pred_fallthru
    _
  // Predicated region
  $region6: #{rnn_forward.1} parent=0 // pred_check
    _
  $region7: #{rnn_forward.1} parent=0 // pred_check_branch
    %16 = sbr.rel (0) target = $region9
  $region8: #{rnn_forward.1} parent=0 // pred_region
    _
  $region9: #{rnn_forward.1} parent=0 // pred_fallthru
    _
  // Predicated region
  $region10: #{rnn_forward.1} parent=0 // pred_check
    _
  $region11: #{rnn_forward.1} parent=0 // pred_check_branch
    %18 = sbr.rel (0) target = $region13
  $region12: #{rnn_forward.1} parent=0 // pred_region
    _
  $region13: #{rnn_forward.1} parent=0 // pred_fallthru
    _
  // Predicated region
  $region14: #{rnn_forward.1} parent=0 // pred_check
    _
  $region15: #{rnn_forward.1} parent=0 // pred_check_branch
    %20 = sbr.rel (0) target = $region17
  $region16: #{rnn_forward.1} parent=0 // pred_region
    _
  $region17: #{rnn_forward.1} parent=0 // pred_fallthru
    _
  // Predicated region
  $region18: #{rnn_forward.1} parent=0 // pred_check
    _
  $region19: #{rnn_forward.1} parent=0 // pred_check_branch
    %22 = sbr.rel (0) target = $region21
  $region20: #{rnn_forward.1} parent=0 // pred_region
    _
  $region21: #{rnn_forward.1} parent=0 // pred_fallthru
    _
  // Predicated region
  $region22: #{rnn_forward.1} parent=0 // pred_check
    _
  $region23: #{rnn_forward.1} parent=0 // pred_check_branch
    %24 = sbr.rel (0) target = $region25
  $region24: #{rnn_forward.1} parent=0 // pred_region
    _
  $region25: #{rnn_forward.1} parent=0 // pred_fallthru
    _
  %v25 = vlaneseq
  %v26 = vand.u32 %v25, 127
  %v27 = vld [vmem:[%s0] sm:$0xff]
  %28 = vset.pattern.permute.xlu0 0
  %29 = vperm.xlu0 %28, %v27
  %v30 = vpop.permute.xlu0 %29
  %vm31 = vcmp.eq.s32.totalorder %v26, %v30
  %v32 = vsel %vm31, 1, 0
  %v33 = vcvt.s32.f32 %v32
  %v34 = vld [vmem:[%s2] sm:$0xff]
  %v35 = vld [vmem:[%s2 + $0x8] sm:$0xff]
  %v36 = vld [vmem:[%s1] sm:$0xff]
  %v37 = vld [vmem:[%s3] sm:$0xff]
  %v38 = vld [vmem:[%s3 + $0x8] sm:$0xff]
  %v39 = vld [vmem:[%s3 + $0x10] sm:$0xff]
  %v40 = vld [vmem:[%s3 + $0x18] sm:$0xff]
  %vm41 = vcmask 261120
  %v43 = vsel %vm41, %v36, 0
  %45 = vmatprep.subr.mxu0 0.0
  %46 = vmatpush1.msra.mxu0 %v37
  %47 = vmatprep.subr.mxu0 0.0
  %48 = vmatpush1.msra.mxu0 %v38
  %49 = vmatprep.subr.mxu0 0.0
  %50 = vmatpush1.msra.mxu0 %v39
  %51 = vmatprep.subr.mxu0 0.0
  %52 = vmatpush1.msra.mxu0 %v40
  %53 = vmatprep.subr.mxu0 0.0
  %54 = vmatpush1.msra.mxu0 0.0
  %55 = vmatprep.subr.mxu0 0.0
  %56 = vmatpush1.msra.mxu0 0.0
  %57 = vmatprep.subr.mxu0 0.0
  %58 = vmatpush1.msra.mxu0 0.0
  %59 = vmatprep.subr.mxu0 0.0
  %60 = vmatpush1.msra.mxu0 0.0
  %61 = vmatprep.subr.mxu0 0.0
  %62 = vmatpush1.msra.mxu0 0.0
  %63 = vmatprep.subr.mxu0 0.0
  %64 = vmatpush1.msra.mxu0 0.0
  %65 = vmatprep.subr.mxu0 0.0
  %66 = vmatpush1.msra.mxu0 0.0
  %67 = vmatprep.subr.mxu0 0.0
  %68 = vmatpush1.msra.mxu0 0.0
  %69 = vmatprep.subr.mxu0 0.0
  %70 = vmatpush1.msra.mxu0 0.0
  %71 = vmatprep.subr.mxu0 0.0
  %72 = vmatpush1.msra.mxu0 0.0
  %73 = vmatprep.subr.mxu0 0.0
  %74 = vmatpush1.msra.mxu0 0.0
  %75 = vmatprep.subr.mxu0 0.0
  %76 = vmatpush1.msra.mxu0 0.0
  %77 = vmatprep.subr.mxu0 0.0
  %78 = vmatpush1.msra.mxu0 0.0
  %79 = vmatprep.subr.mxu0 0.0
  %80 = vmatpush1.msra.mxu0 0.0
  %81 = vmatprep.subr.mxu0 0.0
  %82 = vmatpush1.msra.mxu0 0.0
  %83 = vmatprep.subr.mxu0 0.0
  %84 = vmatpush1.msra.mxu0 0.0
  %85 = vmatprep.subr.mxu0 0.0
  %86 = vmatpush1.msra.mxu0 0.0
  %87 = vmatprep.subr.mxu0 0.0
  %88 = vmatpush1.msra.mxu0 0.0
  %89 = vmatprep.subr.mxu0 0.0
  %90 = vmatpush1.msra.mxu0 0.0
  %91 = vmatprep.subr.mxu0 0.0
  %92 = vmatpush1.msra.mxu0 0.0
  %93 = vmatprep.subr.mxu0 0.0
  %94 = vmatpush1.msra.mxu0 0.0
  %95 = vmatprep.subr.mxu0 0.0
  %96 = vmatpush1.msra.mxu0 0.0
  %97 = vmatprep.subr.mxu0 0.0
  %98 = vmatpush1.msra.mxu0 0.0
  %99 = vmatprep.subr.mxu0 0.0
  %100 = vmatpush1.msra.mxu0 0.0
  %101 = vmatprep.subr.mxu0 0.0
  %102 = vmatpush1.msra.mxu0 0.0
  %103 = vmatprep.subr.mxu0 0.0
  %104 = vmatpush1.msra.mxu0 0.0
  %105 = vmatprep.subr.mxu0 0.0
  %106 = vmatpush1.msra.mxu0 0.0
  %107 = vmatprep.subr.mxu0 0.0
  %108 = vmatpush1.msra.mxu0 0.0
  %109 = vmatprep.mubr.f32.mxu0 0.0
  %110 = vmatmul.mubr.f32.gmra.mrb[0].mxu0 %v43
  %v111 = vpop.f32.mrb[0].mxu0
  %v112 = vadd.f32 0.0, %v111
  %v113 = vpop.f32.mrb[0].mxu0
  %114 = vdwg.mxu0
  %vm115 = vcmask 130048
  %v117 = vsel %vm115, %v33, 0
  %119 = vmatprep.subr.mxu0 0.0
  %120 = vmatpush1.msra.mxu0 %v34
  %121 = vmatprep.subr.mxu0 0.0
  %122 = vmatpush1.msra.mxu0 %v35
  %123 = vmatprep.subr.mxu0 0.0
  %124 = vmatpush1.msra.mxu0 0.0
  %125 = vmatprep.subr.mxu0 0.0
  %126 = vmatpush1.msra.mxu0 0.0
  %127 = vmatprep.subr.mxu0 0.0
  %128 = vmatpush1.msra.mxu0 0.0
  %129 = vmatprep.subr.mxu0 0.0
  %130 = vmatpush1.msra.mxu0 0.0
  %131 = vmatprep.subr.mxu0 0.0
  %132 = vmatpush1.msra.mxu0 0.0
  %133 = vmatprep.subr.mxu0 0.0
  %134 = vmatpush1.msra.mxu0 0.0
  %135 = vmatprep.subr.mxu0 0.0
  %136 = vmatpush1.msra.mxu0 0.0
  %137 = vmatprep.subr.mxu0 0.0
  %138 = vmatpush1.msra.mxu0 0.0
  %139 = vmatprep.subr.mxu0 0.0
  %140 = vmatpush1.msra.mxu0 0.0
  %141 = vmatprep.subr.mxu0 0.0
  %142 = vmatpush1.msra.mxu0 0.0
  %143 = vmatprep.subr.mxu0 0.0
  %144 = vmatpush1.msra.mxu0 0.0
  %145 = vmatprep.subr.mxu0 0.0
  %146 = vmatpush1.msra.mxu0 0.0
  %147 = vmatprep.subr.mxu0 0.0
  %148 = vmatpush1.msra.mxu0 0.0
  %149 = vmatprep.subr.mxu0 0.0
  %150 = vmatpush1.msra.mxu0 0.0
  %151 = vmatprep.subr.mxu0 0.0
  %152 = vmatpush1.msra.mxu0 0.0
  %153 = vmatprep.subr.mxu0 0.0
  %154 = vmatpush1.msra.mxu0 0.0
  %155 = vmatprep.subr.mxu0 0.0
  %156 = vmatpush1.msra.mxu0 0.0
  %157 = vmatprep.subr.mxu0 0.0
  %158 = vmatpush1.msra.mxu0 0.0
  %159 = vmatprep.subr.mxu0 0.0
  %160 = vmatpush1.msra.mxu0 0.0
  %161 = vmatprep.subr.mxu0 0.0
  %162 = vmatpush1.msra.mxu0 0.0
  %163 = vmatprep.subr.mxu0 0.0
  %164 = vmatpush1.msra.mxu0 0.0
  %165 = vmatprep.subr.mxu0 0.0
  %166 = vmatpush1.msra.mxu0 0.0
  %167 = vmatprep.subr.mxu0 0.0
  %168 = vmatpush1.msra.mxu0 0.0
  %169 = vmatprep.subr.mxu0 0.0
  %170 = vmatpush1.msra.mxu0 0.0
  %171 = vmatprep.subr.mxu0 0.0
  %172 = vmatpush1.msra.mxu0 0.0
  %173 = vmatprep.subr.mxu0 0.0
  %174 = vmatpush1.msra.mxu0 0.0
  %175 = vmatprep.subr.mxu0 0.0
  %176 = vmatpush1.msra.mxu0 0.0
  %177 = vmatprep.subr.mxu0 0.0
  %178 = vmatpush1.msra.mxu0 0.0
  %179 = vmatprep.subr.mxu0 0.0
  %180 = vmatpush1.msra.mxu0 0.0
  %181 = vmatprep.subr.mxu0 0.0
  %182 = vmatpush1.msra.mxu0 0.0
  %183 = vmatprep.mubr.f32.mxu0 0.0
  %184 = vmatmul.mubr.f32.gmra.mrb[0].mxu0 %v117
  %v185 = vpop.f32.mrb[0].mxu0
  %v186 = vadd.f32 %v112, %v185
  %v187 = vpop.f32.mrb[0].mxu0
  %188 = vdwg.mxu0
  %v189 = vtanh.pop %v186
  %190 = vst.msk [vmem:[%s7] sm:$0xff] %vm41, %v189
  %v191 = vld [vmem:[%s4] sm:$0xff]
  %v192 = vld [vmem:[%s4 + $0x8] sm:$0xff]
  %v193 = vld [vmem:[%s4 + $0x10] sm:$0xff]
  %v194 = vld [vmem:[%s4 + $0x18] sm:$0xff]
  %v195 = vld [vmem:[%s5] sm:$0x1]
  %v197 = vlaneseq
  %v198 = vshrl.u32 %v197, 7
  %v199 = vsub.s32 0, %v198
  %v200 = vrot.slane %v195, %v199
  %v203 = vsel %vm41, %v189, 0
  %205 = vmatprep.subr.mxu0 0.0
  %206 = vmatpush1.msra.mxu0 %v191
  %207 = vmatprep.subr.mxu0 0.0
  %208 = vmatpush1.msra.mxu0 %v192
  %209 = vmatprep.subr.mxu0 0.0
  %210 = vmatpush1.msra.mxu0 %v193
  %211 = vmatprep.subr.mxu0 0.0
  %212 = vmatpush1.msra.mxu0 %v194
  %213 = vmatprep.subr.mxu0 0.0
  %214 = vmatpush1.msra.mxu0 0.0
  %215 = vmatprep.subr.mxu0 0.0
  %216 = vmatpush1.msra.mxu0 0.0
  %217 = vmatprep.subr.mxu0 0.0
  %218 = vmatpush1.msra.mxu0 0.0
  %219 = vmatprep.subr.mxu0 0.0
  %220 = vmatpush1.msra.mxu0 0.0
  %221 = vmatprep.subr.mxu0 0.0
  %222 = vmatpush1.msra.mxu0 0.0
  %223 = vmatprep.subr.mxu0 0.0
  %224 = vmatpush1.msra.mxu0 0.0
  %225 = vmatprep.subr.mxu0 0.0
  %226 = vmatpush1.msra.mxu0 0.0
  %227 = vmatprep.subr.mxu0 0.0
  %228 = vmatpush1.msra.mxu0 0.0
  %229 = vmatprep.subr.mxu0 0.0
  %230 = vmatpush1.msra.mxu0 0.0
  %231 = vmatprep.subr.mxu0 0.0
  %232 = vmatpush1.msra.mxu0 0.0
  %233 = vmatprep.subr.mxu0 0.0
  %234 = vmatpush1.msra.mxu0 0.0
  %235 = vmatprep.subr.mxu0 0.0
  %236 = vmatpush1.msra.mxu0 0.0
  %237 = vmatprep.subr.mxu0 0.0
  %238 = vmatpush1.msra.mxu0 0.0
  %239 = vmatprep.subr.mxu0 0.0
  %240 = vmatpush1.msra.mxu0 0.0
  %241 = vmatprep.subr.mxu0 0.0
  %242 = vmatpush1.msra.mxu0 0.0
  %243 = vmatprep.subr.mxu0 0.0
  %244 = vmatpush1.msra.mxu0 0.0
  %245 = vmatprep.subr.mxu0 0.0
  %246 = vmatpush1.msra.mxu0 0.0
  %247 = vmatprep.subr.mxu0 0.0
  %248 = vmatpush1.msra.mxu0 0.0
  %249 = vmatprep.subr.mxu0 0.0
  %250 = vmatpush1.msra.mxu0 0.0
  %251 = vmatprep.subr.mxu0 0.0
  %252 = vmatpush1.msra.mxu0 0.0
  %253 = vmatprep.subr.mxu0 0.0
  %254 = vmatpush1.msra.mxu0 0.0
  %255 = vmatprep.subr.mxu0 0.0
  %256 = vmatpush1.msra.mxu0 0.0
  %257 = vmatprep.subr.mxu0 0.0
  %258 = vmatpush1.msra.mxu0 0.0
  %259 = vmatprep.subr.mxu0 0.0
  %260 = vmatpush1.msra.mxu0 0.0
  %261 = vmatprep.subr.mxu0 0.0
  %262 = vmatpush1.msra.mxu0 0.0
  %263 = vmatprep.subr.mxu0 0.0
  %264 = vmatpush1.msra.mxu0 0.0
  %265 = vmatprep.subr.mxu0 0.0
  %266 = vmatpush1.msra.mxu0 0.0
  %267 = vmatprep.subr.mxu0 0.0
  %268 = vmatpush1.msra.mxu0 0.0
  %269 = vmatprep.mubr.f32.mxu0 0.0
  %270 = vmatmul.mubr.f32.gmra.mrb[0].mxu0 %v203
  %v271 = vpop.f32.mrb[0].mxu0
  %v272 = vadd.f32 %v200, %v271
  %v273 = vpop.f32.mrb[0].mxu0
  %274 = vdwg.mxu0
  %vm275 = vcmask 64512
  %276 = vst.msk [vmem:[%s6] sm:$0xff] %vm275, %v272
  // Predicated region
  $region26: #{rnn_forward.1} parent=0 // pred_check
    _
  $region27: #{rnn_forward.1} parent=0 // pred_check_branch
    %278 = sbr.rel (0) target = $region29
  $region28: #{rnn_forward.1} parent=0 // pred_region
    _
  $region29: #{rnn_forward.1} parent=0 // pred_fallthru
    _
  // Predicated region
  $region30: #{rnn_forward.1} parent=0 // pred_check
    _
  $region31: #{rnn_forward.1} parent=0 // pred_check_branch
    %280 = sbr.rel (0) target = $region33
  $region32: #{rnn_forward.1} parent=0 // pred_region
    _
  $region33: #{rnn_forward.1} parent=0 // pred_fallthru
    _
  // Predicated region
  $region34: #{rnn_forward.1} parent=0 // pred_check
    _
  $region35: #{rnn_forward.1} parent=0 // pred_check_branch
    %282 = sbr.rel (0) target = $region37
  $region36: #{rnn_forward.1} parent=0 // pred_region
    _
  $region37: #{rnn_forward.1} parent=0 // pred_fallthru
    _
  // Predicated region
  $region38: #{rnn_forward.1} parent=0 // pred_check
    _
  $region39: #{rnn_forward.1} parent=0 // pred_check_branch
    %284 = sbr.rel (0) target = $region41
  $region40: #{rnn_forward.1} parent=0 // pred_region
    _
  $region41: #{rnn_forward.1} parent=0 // pred_fallthru
    _

</llo_original>
